<compile_context>
chip_gen: v6e
topology: v6e:2x2x1
jax: 0.10.0
libtpu: 0.0.40
codegen_flags: <defaults>
</compile_context>

<pallas_src>
import functools

import jax
import jax.numpy as jnp
from jax.experimental import pallas as pl
from jax.experimental.pallas import tpu as pltpu


def _generator_kernel(x_ref, w1_ref, b1_ref, w2_ref, b2_ref, w3_ref, b3_ref,
                      o_ref):
    # Whole MLP on one resident batch tile:
    # 3 MXU matmuls (f32 accumulation) + VPU bias adds + EUP tanh.
    x = x_ref[...].astype(w1_ref.dtype)          # cast to bf16 in-kernel
    h1 = jnp.tanh(
        jnp.dot(x, w1_ref[...], preferred_element_type=jnp.float32)
        + b1_ref[...])
    h1 = h1.astype(w2_ref.dtype)                 # back to bf16 for the MXU
    h2 = jnp.tanh(
        jnp.dot(h1, w2_ref[...], preferred_element_type=jnp.float32)
        + b2_ref[...])
    h2 = h2.astype(w3_ref.dtype)
    o_ref[...] = (
        jnp.dot(h2, w3_ref[...], preferred_element_type=jnp.float32)
        + b3_ref[...]).astype(o_ref.dtype)


def _round_up(n, m):
    return ((n + m - 1) // m) * m


def _pad2d(a, rows, cols):
    r, c = a.shape
    return jnp.pad(a, ((0, rows - r), (0, cols - c)))


def _pick_block_m(batch):
    """Batch tile: multiple of 16 (bf16 sublane packing), single grid step
    whenever the batch fits in one <=1024-row tile.  Only very large batches
    split (per-step work then dwarfs the ~0.35us fixed step overhead, and on
    v7x the steps are big enough to keep both TensorCores busy)."""
    return min(1024, _round_up(batch, 16))


def prepare_generator_params(w1, b1, w2, b2, w3, b3, *,
                             compute_dtype=jnp.bfloat16):
    """One-time prep (hoisted out of the forward hot path):
    - weights cast to the MXU compute dtype (bf16 by default),
    - hidden dims zero-padded to a multiple of 128 so intermediates occupy
      full 128-lane vregs (padded rows/cols are zero; tanh(0)=0, so they
      contribute nothing and numerics are unchanged),
    - the OUTPUT dim is left unpadded (lane-masked 8-wide store is far
      cheaper than a 16x-inflated padded writeback),
    - biases kept in f32 (bias add + tanh run in f32 inside the kernel)."""
    in_dim, hidden = w1.shape
    out_dim = w3.shape[1]
    hid_p = _round_up(hidden, 128)

    w1p = _pad2d(w1.astype(compute_dtype), in_dim, hid_p)
    w2p = _pad2d(w2.astype(compute_dtype), hid_p, hid_p)
    w3p = _pad2d(w3.astype(compute_dtype), hid_p, out_dim)
    b1p = _pad2d(b1.astype(jnp.float32), 1, hid_p)
    b2p = _pad2d(b2.astype(jnp.float32), 1, hid_p)
    b3p = b3.astype(jnp.float32)
    return (w1p, b1p, w2p, b2p, w3p, b3p)


@functools.partial(jax.jit, static_argnames=("block_m", "out_dtype"))
def generator_forward(x, params, *, block_m=None, out_dtype=None):
    """x: [B, in] (f32); params: output of prepare_generator_params."""
    w1p, b1p, w2p, b2p, w3p, b3p = params
    B, in_dim = x.shape
    hid_p = w1p.shape[1]
    out_dim = w3p.shape[1]

    if block_m is None:
        block_m = _pick_block_m(B)
    if out_dtype is None:
        out_dtype = x.dtype          # f32 by default; pass bf16 to halve writeback

    grid = (pl.cdiv(B, block_m),)

    # Advisory cost estimate so XLA can overlap this small custom call.
    flops = 2 * B * (in_dim * hid_p + hid_p * hid_p + hid_p * out_dim)
    transcendentals = 2 * B * hid_p
    bytes_accessed = (
        x.size * x.dtype.itemsize
        + sum(int(p.size) * p.dtype.itemsize for p in params)
        + B * out_dim * jnp.dtype(out_dtype).itemsize)

    return pl.pallas_call(
        _generator_kernel,
        out_shape=jax.ShapeDtypeStruct((B, out_dim), out_dtype),
        grid_spec=pltpu.PrefetchScalarGridSpec(
            num_scalar_prefetch=0,
            grid=grid,
            in_specs=[
                # Batch tile of the input (f32; cast to bf16 inside kernel).
                # If B % block_m != 0, the out-of-range rows of the last tile
                # are padding; their results are masked on writeback by the
                # blocked out_spec, so they never reach HBM.
                pl.BlockSpec((block_m, in_dim), lambda i: (i, 0)),
                # Weights / biases: grid-invariant blocks (constant index_map),
                # DMA'd once and resident in VMEM for every batch tile.
                pl.BlockSpec((in_dim, hid_p), lambda i: (0, 0)),
                pl.BlockSpec((1, hid_p), lambda i: (0, 0)),
                pl.BlockSpec((hid_p, hid_p), lambda i: (0, 0)),
                pl.BlockSpec((1, hid_p), lambda i: (0, 0)),
                pl.BlockSpec((hid_p, out_dim), lambda i: (0, 0)),
                pl.BlockSpec((1, out_dim), lambda i: (0, 0)),
            ],
            # Output stored at its TRUE width (block last dim == full array
            # dim), no padded columns, no out-of-kernel slice.
            out_specs=pl.BlockSpec((block_m, out_dim), lambda i: (i, 0)),
        ),
        compiler_params=pltpu.CompilerParams(
            dimension_semantics=("parallel",)),
        cost_estimate=pl.CostEstimate(
            flops=flops,
            transcendentals=transcendentals,
            bytes_accessed=bytes_accessed),
    )(x, w1p, b1p, w2p, b2p, w3p, b3p)


def init_generator_params(key, input_size, hidden_size, output_size):
    """Deterministic synthetic params (PyTorch-style uniform init ranges)."""
    ks = jax.random.split(key, 6)

    def lin(kw, kb, fan_in, fan_out):
        bound = 1.0 / jnp.sqrt(fan_in)
        # stored as [in, out]  (== transposed PyTorch [out, in])
        w = jax.random.uniform(kw, (fan_in, fan_out), jnp.float32,
                               minval=-bound, maxval=bound)
        b = jax.random.uniform(kb, (1, fan_out), jnp.float32,
                               minval=-bound, maxval=bound)
        return w, b

    w1, b1 = lin(ks[0], ks[1], input_size, hidden_size)
    w2, b2 = lin(ks[2], ks[3], hidden_size, hidden_size)
    w3, b3 = lin(ks[4], ks[5], hidden_size, output_size)
    return w1, b1, w2, b2, w3, b3


def generator_reference(x, w1, b1, w2, b2, w3, b3):
    h1 = jnp.tanh(x @ w1 + b1)
    h2 = jnp.tanh(h1 @ w2 + b2)
    return h2 @ w3 + b3


if __name__ == "__main__":
    # Shapes consistent with the module: Generator(input_size=8,
    # hidden_size=32, output_size=8) at batch=64 -> one (64,*) batch tile,
    # a single grid step.
    input_size, hidden_size, output_size = 8, 32, 8
    batch = 64

    key = jax.random.PRNGKey(0)
    k_x, k_p = jax.random.split(key)
    x = jax.random.normal(k_x, (batch, input_size), jnp.float32)
    raw_params = init_generator_params(k_p, input_size, hidden_size,
                                       output_size)
    # One-time weight cast/pad, outside the per-call hot path.
    params = prepare_generator_params(*raw_params)
    params = jax.block_until_ready(params)

    out = generator_forward(x, params)
    out = jax.block_until_ready(out)

    ref = generator_reference(x, *raw_params)
    assert out.shape == (batch, output_size)
    # bf16 matmul operands with f32 accumulation vs. pure-f32 reference.
    assert jnp.allclose(out, ref, atol=5e-2, rtol=5e-2), "mismatch vs reference"

    print("KERNEL_OK")
</pallas_src>

<mosaic_0001>
module attributes {stable_mosaic.version = 11 : i64} {
  func.func @_generator_kernel(%arg0: i32, %arg1: memref<64x8xf32, #tpu.memory_space<vmem>>, %arg2: memref<8x128xbf16, #tpu.memory_space<vmem>>, %arg3: memref<1x128xf32, #tpu.memory_space<vmem>>, %arg4: memref<128x128xbf16, #tpu.memory_space<vmem>>, %arg5: memref<1x128xf32, #tpu.memory_space<vmem>>, %arg6: memref<128x8xbf16, #tpu.memory_space<vmem>>, %arg7: memref<1x8xf32, #tpu.memory_space<vmem>>, %arg8: memref<64x8xf32, #tpu.memory_space<vmem>>) attributes {dimension_semantics = [#tpu.dimension_semantics<parallel>], iteration_bounds = array<i64: 1>, scalar_prefetch = 0 : i64, scratch_operands = 0 : i64, tpu.core_type = #tpu.core_type<tc>, window_params = [{transform_indices = @transform_0, window_bounds = array<i64: 64, 8>}, {pipeline_mode = #tpu.pipeline_mode<synchronous>, transform_indices = @transform_1, window_bounds = array<i64: 8, 128>}, {pipeline_mode = #tpu.pipeline_mode<synchronous>, transform_indices = @transform_2, window_bounds = array<i64: 1, 128>}, {pipeline_mode = #tpu.pipeline_mode<synchronous>, transform_indices = @transform_3, window_bounds = array<i64: 128, 128>}, {pipeline_mode = #tpu.pipeline_mode<synchronous>, transform_indices = @transform_4, window_bounds = array<i64: 1, 128>}, {pipeline_mode = #tpu.pipeline_mode<synchronous>, transform_indices = @transform_5, window_bounds = array<i64: 128, 8>}, {pipeline_mode = #tpu.pipeline_mode<synchronous>, transform_indices = @transform_6, window_bounds = array<i64: 1, 8>}, {transform_indices = @transform_7, window_bounds = array<i64: 64, 8>}]} {
    %c0 = arith.constant 0 : index
    %c0_0 = arith.constant 0 : index
    %0 = vector.load %arg1[%c0, %c0_0] : memref<64x8xf32, #tpu.memory_space<vmem>>, vector<64x8xf32>
    %1 = arith.truncf %0 : vector<64x8xf32> to vector<64x8xbf16>
    %c0_1 = arith.constant 0 : index
    %c0_2 = arith.constant 0 : index
    %2 = vector.load %arg2[%c0_1, %c0_2] : memref<8x128xbf16, #tpu.memory_space<vmem>>, vector<8x128xbf16>
    %cst = arith.constant dense<0.000000e+00> : vector<64x128xf32>
    %3 = tpu.matmul %1, %2, %cst {dimension_numbers = #tpu.dot_dimension_numbers<[1], [0], [0], [1], [0, 0, 1, 1], [], []>} : vector<64x8xbf16>, vector<8x128xbf16>, vector<64x128xf32> -> vector<64x128xf32>
    %c0_3 = arith.constant 0 : index
    %c0_4 = arith.constant 0 : index
    %4 = vector.load %arg3[%c0_3, %c0_4] : memref<1x128xf32, #tpu.memory_space<vmem>>, vector<1x128xf32>
    %5 = vector.broadcast %4 : vector<1x128xf32> to vector<64x128xf32>
    %6 = arith.addf %3, %5 : vector<64x128xf32>
    %7 = math.tanh %6 : vector<64x128xf32>
    %8 = arith.truncf %7 : vector<64x128xf32> to vector<64x128xbf16>
    %c0_5 = arith.constant 0 : index
    %c0_6 = arith.constant 0 : index
    %9 = vector.load %arg4[%c0_5, %c0_6] : memref<128x128xbf16, #tpu.memory_space<vmem>>, vector<128x128xbf16>
    %cst_7 = arith.constant dense<0.000000e+00> : vector<64x128xf32>
    %10 = tpu.matmul %8, %9, %cst_7 {dimension_numbers = #tpu.dot_dimension_numbers<[1], [0], [0], [1], [0, 0, 1, 1], [], []>} : vector<64x128xbf16>, vector<128x128xbf16>, vector<64x128xf32> -> vector<64x128xf32>
    %c0_8 = arith.constant 0 : index
    %c0_9 = arith.constant 0 : index
    %11 = vector.load %arg5[%c0_8, %c0_9] : memref<1x128xf32, #tpu.memory_space<vmem>>, vector<1x128xf32>
    %12 = vector.broadcast %11 : vector<1x128xf32> to vector<64x128xf32>
    %13 = arith.addf %10, %12 : vector<64x128xf32>
    %14 = math.tanh %13 : vector<64x128xf32>
    %15 = arith.truncf %14 : vector<64x128xf32> to vector<64x128xbf16>
    %c0_10 = arith.constant 0 : index
    %c0_11 = arith.constant 0 : index
    %16 = vector.load %arg6[%c0_10, %c0_11] : memref<128x8xbf16, #tpu.memory_space<vmem>>, vector<128x8xbf16>
    %cst_12 = arith.constant dense<0.000000e+00> : vector<64x8xf32>
    %17 = tpu.matmul %15, %16, %cst_12 {dimension_numbers = #tpu.dot_dimension_numbers<[1], [0], [0], [1], [0, 0, 1, 1], [], []>} : vector<64x128xbf16>, vector<128x8xbf16>, vector<64x8xf32> -> vector<64x8xf32>
    %c0_13 = arith.constant 0 : index
    %c0_14 = arith.constant 0 : index
    %18 = vector.load %arg7[%c0_13, %c0_14] : memref<1x8xf32, #tpu.memory_space<vmem>>, vector<1x8xf32>
    %19 = vector.broadcast %18 : vector<1x8xf32> to vector<64x8xf32>
    %20 = arith.addf %17, %19 : vector<64x8xf32>
    %c0_15 = arith.constant 0 : index
    %c0_16 = arith.constant 0 : index
    %21 = vector.load %arg8[%c0_15, %c0_16] : memref<64x8xf32, #tpu.memory_space<vmem>>, vector<64x8xf32>
    tpu.vector_store %arg8[%c0_15, %c0_16], %20 {strides = array<i32>} : memref<64x8xf32, #tpu.memory_space<vmem>>, vector<64x8xf32>,
    return
  }
  func.func @transform_0(%arg0: i32) -> (i32, i32) {
    %c0_i32 = arith.constant 0 : i32
    %c0_i32_0 = arith.constant 0 : i32
    return %arg0, %c0_i32 : i32, i32
  }
  func.func @transform_1(%arg0: i32) -> (i32, i32) {
    %c0_i32 = arith.constant 0 : i32
    %c0_i32_0 = arith.constant 0 : i32
    %c0_i32_1 = arith.constant 0 : i32
    return %c0_i32, %c0_i32_0 : i32, i32
  }
  func.func @transform_2(%arg0: i32) -> (i32, i32) {
    %c0_i32 = arith.constant 0 : i32
    %c0_i32_0 = arith.constant 0 : i32
    %c0_i32_1 = arith.constant 0 : i32
    return %c0_i32, %c0_i32_0 : i32, i32
  }
  func.func @transform_3(%arg0: i32) -> (i32, i32) {
    %c0_i32 = arith.constant 0 : i32
    %c0_i32_0 = arith.constant 0 : i32
    %c0_i32_1 = arith.constant 0 : i32
    return %c0_i32, %c0_i32_0 : i32, i32
  }
  func.func @transform_4(%arg0: i32) -> (i32, i32) {
    %c0_i32 = arith.constant 0 : i32
    %c0_i32_0 = arith.constant 0 : i32
    %c0_i32_1 = arith.constant 0 : i32
    return %c0_i32, %c0_i32_0 : i32, i32
  }
  func.func @transform_5(%arg0: i32) -> (i32, i32) {
    %c0_i32 = arith.constant 0 : i32
    %c0_i32_0 = arith.constant 0 : i32
    %c0_i32_1 = arith.constant 0 : i32
    return %c0_i32, %c0_i32_0 : i32, i32
  }
  func.func @transform_6(%arg0: i32) -> (i32, i32) {
    %c0_i32 = arith.constant 0 : i32
    %c0_i32_0 = arith.constant 0 : i32
    %c0_i32_1 = arith.constant 0 : i32
    return %c0_i32, %c0_i32_0 : i32, i32
  }
  func.func @transform_7(%arg0: i32) -> (i32, i32) {
    %c0_i32 = arith.constant 0 : i32
    %c0_i32_0 = arith.constant 0 : i32
    return %arg0, %c0_i32 : i32, i32
  }
}

</mosaic_0001>

<llo_original>
// kernel: generator_forward.1
$region0: #{generator_forward.1}
  #allocation0 [shape = 'u32[]', space=smem, size = 0x4, offset = 0x4, fixed_abs, tag = 'smem constant byte address 0x4 - core index']
  #allocation1 [shape = 'u32[144,128]{1,0:T(1,128)}', space=vmem, size = 0x12000, scoped, tag = 'internal scratch']
  %s0 = inlined_call_operand.vmem [shape: f32[64,8], index: 0, kind: input, shape index: {}]
  %s1 = inlined_call_operand.vmem [shape: bf16[8,128], index: 1, kind: input, shape index: {}]
  %s2 = inlined_call_operand.vmem [shape: f32[1,128], index: 2, kind: input, shape index: {}]
  %s3 = inlined_call_operand.vmem [shape: bf16[128,128], index: 3, kind: input, shape index: {}]
  %s4 = inlined_call_operand.vmem [shape: f32[1,128], index: 4, kind: input, shape index: {}]
  %s5 = inlined_call_operand.vmem [shape: bf16[128,8], index: 5, kind: input, shape index: {}]
  %s6 = inlined_call_operand.vmem [shape: f32[1,8], index: 6, kind: input, shape index: {}]
  %s7 = inlined_call_operand.vmem [shape: f32[64,8], index: 7, kind: output, shape index: {}]
  %s8 = sld [smem:[#allocation0]]
  $region38: #{generator_forward.1} parent=0
    _
  %s10 = ssub.s32 1, %s8
  %s11 = scalar_select 0, %s10, %s8
  // Predicated region
  $region2: #{generator_forward.1} parent=0 // pred_check
    _
  $region3: #{generator_forward.1} parent=0 // pred_check_branch
    %13 = sbr.rel (0) target = $region5
  $region4: #{generator_forward.1} parent=0 // pred_region
    _
  $region5: #{generator_forward.1} parent=0 // pred_fallthru
    _
  // Predicated region
  $region6: #{generator_forward.1} parent=0 // pred_check
    _
  $region7: #{generator_forward.1} parent=0 // pred_check_branch
    %15 = sbr.rel (0) target = $region9
  $region8: #{generator_forward.1} parent=0 // pred_region
    _
  $region9: #{generator_forward.1} parent=0 // pred_fallthru
    _
  // Predicated region
  $region10: #{generator_forward.1} parent=0 // pred_check
    _
  $region11: #{generator_forward.1} parent=0 // pred_check_branch
    %17 = sbr.rel (0) target = $region13
  $region12: #{generator_forward.1} parent=0 // pred_region
    _
  $region13: #{generator_forward.1} parent=0 // pred_fallthru
    _
  // Predicated region
  $region14: #{generator_forward.1} parent=0 // pred_check
    _
  $region15: #{generator_forward.1} parent=0 // pred_check_branch
    %19 = sbr.rel (0) target = $region17
  $region16: #{generator_forward.1} parent=0 // pred_region
    _
  $region17: #{generator_forward.1} parent=0 // pred_fallthru
    _
  // Predicated region
  $region18: #{generator_forward.1} parent=0 // pred_check
    _
  $region19: #{generator_forward.1} parent=0 // pred_check_branch
    %21 = sbr.rel (0) target = $region21
  $region20: #{generator_forward.1} parent=0 // pred_region
    _
  $region21: #{generator_forward.1} parent=0 // pred_fallthru
    _
  // Predicated region
  $region22: #{generator_forward.1} parent=0 // pred_check
    _
  $region23: #{generator_forward.1} parent=0 // pred_check_branch
    %23 = sbr.rel (0) target = $region25
  $region24: #{generator_forward.1} parent=0 // pred_region
    _
  $region25: #{generator_forward.1} parent=0 // pred_fallthru
    _
  // Predicated region
  $region26: #{generator_forward.1} parent=0 // pred_check
    _
  $region27: #{generator_forward.1} parent=0 // pred_check_branch
    %25 = sbr.rel (0) target = $region29
  $region28: #{generator_forward.1} parent=0 // pred_region
    _
  $region29: #{generator_forward.1} parent=0 // pred_fallthru
    _
  %v27 = vld [vmem:[%s0] sm:$0xff]
  %v28 = vld [vmem:[%s0 + $0x8] sm:$0xff]
  %v29 = vld [vmem:[%s0 + $0x10] sm:$0xff]
  %v30 = vld [vmem:[%s0 + $0x18] sm:$0xff]
  %v31 = vld [vmem:[%s0 + $0x20] sm:$0xff]
  %v32 = vld [vmem:[%s0 + $0x28] sm:$0xff]
  %v33 = vld [vmem:[%s0 + $0x30] sm:$0xff]
  %v34 = vld [vmem:[%s0 + $0x38] sm:$0xff]
  %v35 = vpack.c.bf16 %v28, %v27
  %v36 = vpack.c.bf16 %v30, %v29
  %v37 = vpack.c.bf16 %v32, %v31
  %v38 = vpack.c.bf16 %v34, %v33
  %v39 = vld [vmem:[%s1] sm:$0xf]
  %v40 = vld [vmem:[%s2] sm:$0x1]
  %v42 = vlaneseq
  %v43 = vshrl.u32 %v42, 7
  %v44 = vsub.s32 0, %v43
  %v45 = vrot.slane %v40, %v44
  %vm47 = vcmask 64512
  %v49 = vsel %vm47, %v35, 0
  %v52 = vsel %vm47, %v36, 0
  %v55 = vsel %vm47, %v37, 0
  %v58 = vsel %vm47, %v38, 0
  %vm60 = vcmask 1043456
  %v62 = vsel %vm60, %v39, 0
  %64 = vmatprep.subr.bf16.mxu0 0
  %65 = vmatpush1.bf16.msra.mxu0 0
  %66 = vmatprep.subr.bf16.mxu0 0
  %67 = vmatpush1.bf16.msra.mxu0 0
  %68 = vmatprep.subr.bf16.mxu0 0
  %69 = vmatpush1.bf16.msra.mxu0 0
  %70 = vmatprep.subr.bf16.mxu0 0
  %71 = vmatpush1.bf16.msra.mxu0 0
  %72 = vmatprep.subr.bf16.mxu0 0
  %73 = vmatpush1.bf16.msra.mxu0 0
  %74 = vmatprep.subr.bf16.mxu0 0
  %75 = vmatpush1.bf16.msra.mxu0 0
  %76 = vmatprep.subr.bf16.mxu0 0
  %77 = vmatpush1.bf16.msra.mxu0 0
  %78 = vmatprep.subr.bf16.mxu0 0
  %79 = vmatpush1.bf16.msra.mxu0 %v62
  %80 = vmatprep.subr.bf16.mxu0 0
  %81 = vmatpush2.bf16.msra.mxu0 0
  %82 = vmatprep.subr.bf16.mxu0 0
  %83 = vmatpush2.bf16.msra.mxu0 0
  %84 = vmatprep.subr.bf16.mxu0 0
  %85 = vmatpush2.bf16.msra.mxu0 0
  %86 = vmatprep.subr.bf16.mxu0 0
  %87 = vmatpush2.bf16.msra.mxu0 0
  %88 = vmatprep.subr.bf16.mxu0 0
  %89 = vmatpush2.bf16.msra.mxu0 0
  %90 = vmatprep.subr.bf16.mxu0 0
  %91 = vmatpush2.bf16.msra.mxu0 0
  %92 = vmatprep.subr.bf16.mxu0 0
  %93 = vmatpush2.bf16.msra.mxu0 0
  %94 = vmatprep.subr.bf16.mxu0 0
  %95 = vmatpush2.bf16.msra.mxu0 0
  %96 = vmatprep.mubr.bf16.mxu0 0
  %97 = vmatmul.mubr.bf16.gmra.mxu0 %v49
  %v98 = vpop.f32.mrf.mxu0
  %v99 = vadd.f32 %v45, %v98
  %v100 = vpop.f32.mrf.mxu0
  %v101 = vpop.f32.mrf.mxu0
  %v102 = vadd.f32 %v45, %v101
  %v103 = vpop.f32.mrf.mxu0
  %104 = vmatprep.mubr.bf16.mxu0 0
  %105 = vmatmul.mubr.bf16.gmra.mxu0 %v52
  %v106 = vpop.f32.mrf.mxu0
  %v107 = vadd.f32 %v45, %v106
  %v108 = vpop.f32.mrf.mxu0
  %v109 = vpop.f32.mrf.mxu0
  %v110 = vadd.f32 %v45, %v109
  %v111 = vpop.f32.mrf.mxu0
  %112 = vmatprep.mubr.bf16.mxu0 0
  %113 = vmatmul.mubr.bf16.gmra.mxu0 %v55
  %v114 = vpop.f32.mrf.mxu0
  %v115 = vadd.f32 %v45, %v114
  %v116 = vpop.f32.mrf.mxu0
  %v117 = vpop.f32.mrf.mxu0
  %v118 = vadd.f32 %v45, %v117
  %v119 = vpop.f32.mrf.mxu0
  %120 = vmatprep.mubr.bf16.mxu0 0
  %121 = vmatmul.mubr.bf16.gmra.mxu0 %v58
  %v122 = vpop.f32.mrf.mxu0
  %v123 = vadd.f32 %v45, %v122
  %v124 = vpop.f32.mrf.mxu0
  %v125 = vpop.f32.mrf.mxu0
  %v126 = vadd.f32 %v45, %v125
  %v127 = vpop.f32.mrf.mxu0
  %128 = vdwg.mxu0
  %v129 = vtanh.pop %v99
  %v130 = vtanh.pop %v102
  %v131 = vtanh.pop %v107
  %v132 = vtanh.pop %v110
  %v133 = vtanh.pop %v115
  %v134 = vtanh.pop %v118
  %v135 = vtanh.pop %v123
  %v136 = vtanh.pop %v126
  %v137 = vpack.c.bf16 %v130, %v129
  %v138 = vpack.c.bf16 %v132, %v131
  %v139 = vpack.c.bf16 %v134, %v133
  %v140 = vpack.c.bf16 %v136, %v135
  %v141 = vld [vmem:[%s3] sm:$0xf]
  %v142 = vld [vmem:[%s3 + $0x4] sm:$0xf]
  %v143 = vld [vmem:[%s3 + $0x8] sm:$0xf]
  %v144 = vld [vmem:[%s3 + $0xc] sm:$0xf]
  %v145 = vld [vmem:[%s3 + $0x10] sm:$0xf]
  %v146 = vld [vmem:[%s3 + $0x14] sm:$0xf]
  %v147 = vld [vmem:[%s3 + $0x18] sm:$0xf]
  %v148 = vld [vmem:[%s3 + $0x1c] sm:$0xf]
  %v149 = vld [vmem:[%s3 + $0x20] sm:$0xf]
  %v150 = vld [vmem:[%s3 + $0x24] sm:$0xf]
  %v151 = vld [vmem:[%s3 + $0x28] sm:$0xf]
  %v152 = vld [vmem:[%s3 + $0x2c] sm:$0xf]
  %v153 = vld [vmem:[%s3 + $0x30] sm:$0xf]
  %v154 = vld [vmem:[%s3 + $0x34] sm:$0xf]
  %v155 = vld [vmem:[%s3 + $0x38] sm:$0xf]
  %v156 = vld [vmem:[%s3 + $0x3c] sm:$0xf]
  %v157 = vld [vmem:[%s4] sm:$0x1]
  %v159 = vlaneseq
  %v160 = vshrl.u32 %v159, 7
  %v161 = vsub.s32 0, %v160
  %v162 = vrot.slane %v157, %v161
  %v180 = vunpack.c.l.b16 %v141
  %v181 = vunpack.c.l.b16 %v142
  %v182 = vunpack.c.l.b16 %v143
  %v183 = vunpack.c.l.b16 %v144
  %v184 = vunpack.c.l.b16 %v145
  %v185 = vunpack.c.l.b16 %v146
  %v186 = vunpack.c.l.b16 %v147
  %v187 = vunpack.c.l.b16 %v148
  %v188 = vunpack.c.l.b16 %v149
  %v189 = vunpack.c.l.b16 %v150
  %v190 = vunpack.c.l.b16 %v151
  %v191 = vunpack.c.l.b16 %v152
  %v192 = vunpack.c.l.b16 %v153
  %v193 = vunpack.c.l.b16 %v154
  %v194 = vunpack.c.l.b16 %v155
  %v195 = vunpack.c.l.b16 %v156
  %v196 = vpack.c.b16 %v181, %v180
  %v197 = vpack.c.b16 %v183, %v182
  %v198 = vpack.c.b16 %v185, %v184
  %v199 = vpack.c.b16 %v187, %v186
  %v200 = vpack.c.b16 %v189, %v188
  %v201 = vpack.c.b16 %v191, %v190
  %v202 = vpack.c.b16 %v193, %v192
  %v203 = vpack.c.b16 %v195, %v194
  %212 = vmatprep.subr.bf16.mxu0 0
  %213 = vmatpush1.bf16.msra.mxu0 %v203
  %214 = vmatprep.subr.bf16.mxu0 0
  %215 = vmatpush1.bf16.msra.mxu0 %v202
  %216 = vmatprep.subr.bf16.mxu0 0
  %217 = vmatpush1.bf16.msra.mxu0 %v201
  %218 = vmatprep.subr.bf16.mxu0 0
  %219 = vmatpush1.bf16.msra.mxu0 %v200
  %220 = vmatprep.subr.bf16.mxu0 0
  %221 = vmatpush1.bf16.msra.mxu0 %v199
  %222 = vmatprep.subr.bf16.mxu0 0
  %223 = vmatpush1.bf16.msra.mxu0 %v198
  %224 = vmatprep.subr.bf16.mxu0 0
  %225 = vmatpush1.bf16.msra.mxu0 %v197
  %226 = vmatprep.subr.bf16.mxu0 0
  %227 = vmatpush1.bf16.msra.mxu0 %v196
  %228 = vmatprep.subr.bf16.mxu0 0
  %229 = vmatpush2.bf16.msra.mxu0 0
  %230 = vmatprep.subr.bf16.mxu0 0
  %231 = vmatpush2.bf16.msra.mxu0 0
  %232 = vmatprep.subr.bf16.mxu0 0
  %233 = vmatpush2.bf16.msra.mxu0 0
  %234 = vmatprep.subr.bf16.mxu0 0
  %235 = vmatpush2.bf16.msra.mxu0 0
  %236 = vmatprep.subr.bf16.mxu0 0
  %237 = vmatpush2.bf16.msra.mxu0 0
  %238 = vmatprep.subr.bf16.mxu0 0
  %239 = vmatpush2.bf16.msra.mxu0 0
  %240 = vmatprep.subr.bf16.mxu0 0
  %241 = vmatpush2.bf16.msra.mxu0 0
  %242 = vmatprep.subr.bf16.mxu0 0
  %243 = vmatpush2.bf16.msra.mxu0 0
  %244 = vmatprep.mubr.bf16.mxu0 0
  %245 = vmatmul.mubr.bf16.gmra.mxu0 %v137
  %v246 = vpop.f32.mrf.mxu0
  %v247 = vadd.f32 %v162, %v246
  %v248 = vpop.f32.mrf.mxu0
  %v249 = vpop.f32.mrf.mxu0
  %v250 = vadd.f32 %v162, %v249
  %v251 = vpop.f32.mrf.mxu0
  %252 = vmatprep.mubr.bf16.mxu0 0
  %253 = vmatmul.mubr.bf16.gmra.mxu0 %v138
  %v254 = vpop.f32.mrf.mxu0
  %v255 = vadd.f32 %v162, %v254
  %v256 = vpop.f32.mrf.mxu0
  %v257 = vpop.f32.mrf.mxu0
  %v258 = vadd.f32 %v162, %v257
  %v259 = vpop.f32.mrf.mxu0
  %260 = vmatprep.mubr.bf16.mxu0 0
  %261 = vmatmul.mubr.bf16.gmra.mxu0 %v139
  %v262 = vpop.f32.mrf.mxu0
  %v263 = vadd.f32 %v162, %v262
  %v264 = vpop.f32.mrf.mxu0
  %v265 = vpop.f32.mrf.mxu0
  %v266 = vadd.f32 %v162, %v265
  %v267 = vpop.f32.mrf.mxu0
  %268 = vmatprep.mubr.bf16.mxu0 0
  %269 = vmatmul.mubr.bf16.gmra.mxu0 %v140
  %v270 = vpop.f32.mrf.mxu0
  %v271 = vadd.f32 %v162, %v270
  %v272 = vpop.f32.mrf.mxu0
  %v273 = vpop.f32.mrf.mxu0
  %v274 = vadd.f32 %v162, %v273
  %v275 = vpop.f32.mrf.mxu0
  %276 = vdwg.mxu0
  %v277 = vtanh.pop %v247
  %v278 = vtanh.pop %v250
  %v279 = vtanh.pop %v255
  %v280 = vtanh.pop %v258
  %v281 = vtanh.pop %v263
  %v282 = vtanh.pop %v266
  %v283 = vtanh.pop %v271
  %v284 = vtanh.pop %v274
  %v285 = vpack.c.bf16 %v278, %v277
  %v286 = vpack.c.bf16 %v280, %v279
  %v287 = vpack.c.bf16 %v282, %v281
  %v288 = vpack.c.bf16 %v284, %v283
  %v289 = vld [vmem:[%s5] sm:$0xf]
  %v290 = vld [vmem:[%s5 + $0x4] sm:$0xf]
  %v291 = vld [vmem:[%s5 + $0x8] sm:$0xf]
  %v292 = vld [vmem:[%s5 + $0xc] sm:$0xf]
  %v293 = vld [vmem:[%s5 + $0x10] sm:$0xf]
  %v294 = vld [vmem:[%s5 + $0x14] sm:$0xf]
  %v295 = vld [vmem:[%s5 + $0x18] sm:$0xf]
  %v296 = vld [vmem:[%s5 + $0x1c] sm:$0xf]
  %v297 = vld [vmem:[%s5 + $0x20] sm:$0xf]
  %v298 = vld [vmem:[%s5 + $0x24] sm:$0xf]
  %v299 = vld [vmem:[%s5 + $0x28] sm:$0xf]
  %v300 = vld [vmem:[%s5 + $0x2c] sm:$0xf]
  %v301 = vld [vmem:[%s5 + $0x30] sm:$0xf]
  %v302 = vld [vmem:[%s5 + $0x34] sm:$0xf]
  %v303 = vld [vmem:[%s5 + $0x38] sm:$0xf]
  %v304 = vld [vmem:[%s5 + $0x3c] sm:$0xf]
  %v305 = vld [vmem:[%s6] sm:$0x1]
  %v307 = vlaneseq
  %v308 = vshrl.u32 %v307, 7
  %v309 = vsub.s32 0, %v308
  %v310 = vrot.slane %v305, %v309
  %v328 = vunpack.c.l.b16 %v289
  %v329 = vunpack.c.l.b16 %v290
  %v330 = vunpack.c.l.b16 %v291
  %v331 = vunpack.c.l.b16 %v292
  %v332 = vunpack.c.l.b16 %v293
  %v333 = vunpack.c.l.b16 %v294
  %v334 = vunpack.c.l.b16 %v295
  %v335 = vunpack.c.l.b16 %v296
  %v336 = vunpack.c.l.b16 %v297
  %v337 = vunpack.c.l.b16 %v298
  %v338 = vunpack.c.l.b16 %v299
  %v339 = vunpack.c.l.b16 %v300
  %v340 = vunpack.c.l.b16 %v301
  %v341 = vunpack.c.l.b16 %v302
  %v342 = vunpack.c.l.b16 %v303
  %v343 = vunpack.c.l.b16 %v304
  %v344 = vpack.c.b16 %v329, %v328
  %v345 = vpack.c.b16 %v331, %v330
  %v346 = vpack.c.b16 %v333, %v332
  %v347 = vpack.c.b16 %v335, %v334
  %v348 = vpack.c.b16 %v337, %v336
  %v349 = vpack.c.b16 %v339, %v338
  %v350 = vpack.c.b16 %v341, %v340
  %v351 = vpack.c.b16 %v343, %v342
  %360 = vmatprep.subr.bf16.mxu0 0
  %361 = vmatpush1.bf16.msra.mxu0 %v351
  %362 = vmatprep.subr.bf16.mxu0 0
  %363 = vmatpush1.bf16.msra.mxu0 %v350
  %364 = vmatprep.subr.bf16.mxu0 0
  %365 = vmatpush1.bf16.msra.mxu0 %v349
  %366 = vmatprep.subr.bf16.mxu0 0
  %367 = vmatpush1.bf16.msra.mxu0 %v348
  %368 = vmatprep.subr.bf16.mxu0 0
  %369 = vmatpush1.bf16.msra.mxu0 %v347
  %370 = vmatprep.subr.bf16.mxu0 0
  %371 = vmatpush1.bf16.msra.mxu0 %v346
  %372 = vmatprep.subr.bf16.mxu0 0
  %373 = vmatpush1.bf16.msra.mxu0 %v345
  %374 = vmatprep.subr.bf16.mxu0 0
  %375 = vmatpush1.bf16.msra.mxu0 %v344
  %376 = vmatprep.subr.bf16.mxu0 0
  %377 = vmatpush2.bf16.msra.mxu0 0
  %378 = vmatprep.subr.bf16.mxu0 0
  %379 = vmatpush2.bf16.msra.mxu0 0
  %380 = vmatprep.subr.bf16.mxu0 0
  %381 = vmatpush2.bf16.msra.mxu0 0
  %382 = vmatprep.subr.bf16.mxu0 0
  %383 = vmatpush2.bf16.msra.mxu0 0
  %384 = vmatprep.subr.bf16.mxu0 0
  %385 = vmatpush2.bf16.msra.mxu0 0
  %386 = vmatprep.subr.bf16.mxu0 0
  %387 = vmatpush2.bf16.msra.mxu0 0
  %388 = vmatprep.subr.bf16.mxu0 0
  %389 = vmatpush2.bf16.msra.mxu0 0
  %390 = vmatprep.subr.bf16.mxu0 0
  %391 = vmatpush2.bf16.msra.mxu0 0
  %392 = vmatprep.mubr.bf16.mxu0 0
  %393 = vmatmul.mubr.bf16.gmra.mxu0 %v285
  %v394 = vpop.f32.mrf.mxu0
  %v395 = vadd.f32 %v310, %v394
  %v396 = vpop.f32.mrf.mxu0
  %v397 = vpop.f32.mrf.mxu0
  %v398 = vadd.f32 %v310, %v397
  %v399 = vpop.f32.mrf.mxu0
  %400 = vmatprep.mubr.bf16.mxu0 0
  %401 = vmatmul.mubr.bf16.gmra.mxu0 %v286
  %v402 = vpop.f32.mrf.mxu0
  %v403 = vadd.f32 %v310, %v402
  %v404 = vpop.f32.mrf.mxu0
  %v405 = vpop.f32.mrf.mxu0
  %v406 = vadd.f32 %v310, %v405
  %v407 = vpop.f32.mrf.mxu0
  %408 = vmatprep.mubr.bf16.mxu0 0
  %409 = vmatmul.mubr.bf16.gmra.mxu0 %v287
  %v410 = vpop.f32.mrf.mxu0
  %v411 = vadd.f32 %v310, %v410
  %v412 = vpop.f32.mrf.mxu0
  %v413 = vpop.f32.mrf.mxu0
  %v414 = vadd.f32 %v310, %v413
  %v415 = vpop.f32.mrf.mxu0
  %416 = vmatprep.mubr.bf16.mxu0 0
  %417 = vmatmul.mubr.bf16.gmra.mxu0 %v288
  %v418 = vpop.f32.mrf.mxu0
  %v419 = vadd.f32 %v310, %v418
  %v420 = vpop.f32.mrf.mxu0
  %v421 = vpop.f32.mrf.mxu0
  %v422 = vadd.f32 %v310, %v421
  %v423 = vpop.f32.mrf.mxu0
  %424 = vdwg.mxu0
  %425 = vst.msk [vmem:[%s7] sm:$0xff] %vm47, %v395
  %426 = vst.msk [vmem:[%s7 + $0x8] sm:$0xff] %vm47, %v398
  %427 = vst.msk [vmem:[%s7 + $0x10] sm:$0xff] %vm47, %v403
  %428 = vst.msk [vmem:[%s7 + $0x18] sm:$0xff] %vm47, %v406
  %429 = vst.msk [vmem:[%s7 + $0x20] sm:$0xff] %vm47, %v411
  %430 = vst.msk [vmem:[%s7 + $0x28] sm:$0xff] %vm47, %v414
  %431 = vst.msk [vmem:[%s7 + $0x30] sm:$0xff] %vm47, %v419
  %432 = vst.msk [vmem:[%s7 + $0x38] sm:$0xff] %vm47, %v422
  // Predicated region
  $region30: #{generator_forward.1} parent=0 // pred_check
    _
  $region31: #{generator_forward.1} parent=0 // pred_check_branch
    %434 = sbr.rel (0) target = $region33
  $region32: #{generator_forward.1} parent=0 // pred_region
    _
  $region33: #{generator_forward.1} parent=0 // pred_fallthru
    _
  // Predicated region
  $region34: #{generator_forward.1} parent=0 // pred_check
    _
  $region35: #{generator_forward.1} parent=0 // pred_check_branch
    %436 = sbr.rel (0) target = $region37
  $region36: #{generator_forward.1} parent=0 // pred_region
    _
  $region37: #{generator_forward.1} parent=0 // pred_fallthru
    _

</llo_original>
